<compile_context>
chip_gen: v7x
topology: tpu7x:2x2x1
jax: 0.10.0
libtpu: 0.0.40
codegen_flags: <defaults>
</compile_context>

<pallas_src>
import functools

import jax
import jax.numpy as jnp
from jax import lax
from jax.experimental import pallas as pl
from jax.experimental.pallas import tpu as pltpu


def _ceil_div(a, b):
    return -(-a // b)


def _round_up(a, b):
    return _ceil_div(a, b) * b


def _ff_kernel(x_ref, gamma_ref, beta_ref, w1_ref, b1_ref, w2_ref, b2_ref,
               seg_ref, segT_ref, o_ref, xhat_ref, acc_ref, *,
               eps, use_layernorm, use_res, group, inv_d):
    # Grid: (row tiles [parallel], H tiles [arbitrary]).
    # x tile: [bg, G*D] -- each slab row holds G independent logical rows of width D.
    h_idx = pl.program_id(1)
    n_h = pl.num_programs(1)

    @pl.when(h_idx == 0)
    def _ln_and_init():
        xg = x_ref[...].astype(jnp.float32)
        if use_layernorm:
            if group == 1:
                s1 = jnp.sum(xg, axis=-1, keepdims=True)
                s2 = jnp.sum(xg * xg, axis=-1, keepdims=True)
                mu = s1 * inv_d
                var = s2 * inv_d - mu * mu
                a = lax.rsqrt(var + eps)
                xn = xg * a + (-mu * a)
            else:
                # Segmented (per logical row) stats via tiny 0/1 matmuls; E[x^2]-mu^2
                # keeps the two reductions and the two broadcasts independent.
                seg = seg_ref[...]            # [G*D, G]
                segT = segT_ref[...]          # [G, G*D]
                s1 = jnp.dot(xg, seg, preferred_element_type=jnp.float32)
                s2 = jnp.dot(xg * xg, seg, preferred_element_type=jnp.float32)
                mu = s1 * inv_d
                var = s2 * inv_d - mu * mu
                a = lax.rsqrt(var + eps)      # [bg, G]
                b = -mu * a                   # [bg, G]
                xn = (xg * jnp.dot(a, segT, preferred_element_type=jnp.float32)
                      + jnp.dot(b, segT, preferred_element_type=jnp.float32))
            xn = xn * gamma_ref[...] + beta_ref[...]
        else:
            xn = xg
        xhat_ref[...] = xn.astype(xhat_ref.dtype)
        acc_ref[...] = jnp.zeros_like(acc_ref)

    # Linear(res_dim -> inner_dim) tile + ReLU   (bf16 operands on MXU, f32 accumulate)
    h1 = jnp.dot(xhat_ref[...], w1_ref[...],
                 preferred_element_type=jnp.float32) + b1_ref[...]
    h1 = jnp.maximum(h1, 0.0)
    # TODO(synk): first nn.Dropout is identity (inference mode).

    # Partial Linear(inner_dim -> res_dim): accumulate this H tile's contribution.
    acc_ref[...] += jnp.dot(h1.astype(w2_ref.dtype), w2_ref[...],
                            preferred_element_type=jnp.float32)

    @pl.when(h_idx == n_h - 1)
    def _finalize():
        y = acc_ref[...] + b2_ref[...]
        # TODO(synk): second nn.Dropout is identity (inference mode).
        if use_res:
            y = y + x_ref[...].astype(jnp.float32)
        o_ref[...] = y.astype(o_ref.dtype)


def transformer_ff_layers(x, gamma, beta, w1, b1, w2, b2,
                          *, use_layernorm=True, use_res=True, eps=1e-5,
                          matmul_dtype=jnp.bfloat16,
                          target_x_tile_bytes=1 << 20,
                          weight_block_bytes=4 << 20):
    """x: [seq, batch, res_dim]. Returns same shape/dtype."""
    S, B, D = x.shape
    H = w1.shape[1]
    rows = S * B
    out_dtype = x.dtype
    bpe = jnp.dtype(out_dtype).itemsize
    wbpe = jnp.dtype(matmul_dtype).itemsize

    # ---- lane packing: G logical rows side-by-side so the last dim is 128 lanes.
    if D < 128 and 128 % D == 0:
        G = 128 // D
    else:
        G = 1
        # TODO(synk): for D that is not a multiple of 128 the output stores are
        # partially masked; lane-padding to a 128 multiple would avoid vst.msk.
    LW = G * D
    GH = G * H
    inv_d = 1.0 / D

    rows_g = _ceil_div(rows, G)
    rows_full = rows_g * G

    x2d = x.reshape(rows, D)
    if rows_full != rows:
        # tiny pad (< G rows) only so the (rows, D) -> (rows_g, G*D) reshape is legal
        x2d = jnp.pad(x2d, ((0, rows_full - rows), (0, 0)))
    xg = x2d.reshape(rows_g, LW)   # metadata-only reshape (row-major contiguous)

    # ---- weights / params (block-diagonal expansion for G > 1)
    if G == 1:
        w1_blk = w1.astype(matmul_dtype)                                  # [D, H]
        w2_blk = w2.astype(matmul_dtype)                                  # [H, D]
        gamma_t = gamma.astype(jnp.float32).reshape(1, LW)
        beta_t = beta.astype(jnp.float32).reshape(1, LW)
        b1_t = b1.astype(jnp.float32).reshape(1, GH)
        b2_t = b2.astype(jnp.float32).reshape(1, LW)
        seg = jnp.ones((LW, 1), jnp.float32)
        segT = jnp.ones((1, LW), jnp.float32)
    else:
        eye = jnp.eye(G, dtype=jnp.float32)
        w1_blk = jnp.kron(eye, w1.astype(jnp.float32)).astype(matmul_dtype)  # [G*D, G*H]
        w2_blk = jnp.kron(eye, w2.astype(jnp.float32)).astype(matmul_dtype)  # [G*H, G*D]
        gamma_t = jnp.tile(gamma.astype(jnp.float32), G).reshape(1, LW)
        beta_t = jnp.tile(beta.astype(jnp.float32), G).reshape(1, LW)
        b1_t = jnp.tile(b1.astype(jnp.float32), G).reshape(1, GH)
        b2_t = jnp.tile(b2.astype(jnp.float32), G).reshape(1, LW)
        gids = jnp.arange(LW) // D
        seg = (gids[:, None] == jnp.arange(G)[None, :]).astype(jnp.float32)  # [G*D, G]
        segT = seg.T                                                         # [G, G*D]

    # ---- VMEM budget: hardware-aware with headroom (v7x 64 MiB, v5e/v6e 128 MiB)
    try:
        vmem_cap = int(pltpu.get_tpu_info().vmem_capacity_bytes)
    except Exception:
        vmem_cap = 64 << 20
    vmem_limit = int(0.75 * vmem_cap)

    # ---- FF inner-dim (H) tiling so resident weights never blow VMEM (esp. v7x)
    th_budget = max(128, (weight_block_bytes // (LW * wbpe)) // 128 * 128)
    if GH <= th_budget:
        th, n_h, GH_pad = GH, 1, GH
    else:
        th = th_budget
        n_h = _ceil_div(GH, th)
        GH_pad = n_h * th
    if GH_pad != GH:
        # zero-padded hidden units: relu(0 + 0) = 0, times zero W2 rows -> no effect
        w1_blk = jnp.pad(w1_blk, ((0, 0), (0, GH_pad - GH)))
        b1_t = jnp.pad(b1_t, ((0, 0), (0, GH_pad - GH)))
        w2_blk = jnp.pad(w2_blk, ((0, GH_pad - GH), (0, 0)))
    weights_resident = (2 if n_h > 1 else 1) * 2 * LW * th * wbpe + 16 * LW * 4

    # ---- row tiling: large tiles, cdiv grid (ragged last block), no big pad
    rnd = max(8, 32 // bpe)               # sublane rounding: 8 (f32) / 16 (bf16)
    bytes_per_row = LW * bpe
    bg_target = max(rnd, (target_x_tile_bytes // bytes_per_row) // rnd * rnd)
    if rows_g >= 2 * rnd:
        # keep >= 2 row tiles so the "parallel" axis can shard across both v7x cores
        bg_target = min(bg_target, _round_up(_ceil_div(rows_g, 2), rnd))

    def _act_bytes(bg):
        return (4 * bg * LW * bpe                  # x + out, double-buffered
                + bg * LW * (4 + wbpe)             # acc + xhat scratch
                + bg * th * 4 + 3 * bg * LW * 4)   # f32 intermediates
    act_budget = max(1 << 20, vmem_limit - weights_resident - (8 << 20))
    while bg_target > rnd and _act_bytes(bg_target) > act_budget:
        bg_target = max(rnd, ((bg_target // 2) // rnd) * rnd)

    if rows_g <= bg_target:
        bg = rows_g                        # single full-extent block (always legal)
    else:
        bg = bg_target
    grid_rows = _ceil_div(rows_g, bg)

    kernel = functools.partial(_ff_kernel, eps=eps, use_layernorm=use_layernorm,
                               use_res=use_res, group=G, inv_d=inv_d)

    def _spec(shape, index_map, single_buffer):
        if single_buffer:
            try:
                return pl.BlockSpec(shape, index_map, pipeline_mode=pl.Buffered(1))
            except TypeError:
                pass
        return pl.BlockSpec(shape, index_map)

    w_single = (n_h == 1)   # weights are grid-invariant only if a single H tile

    in_specs = [
        pl.BlockSpec((bg, LW), lambda i, h: (i, 0)),      # x slab tile
        _spec((1, LW), lambda i, h: (0, 0), True),        # gamma (tiled)
        _spec((1, LW), lambda i, h: (0, 0), True),        # beta (tiled)
        _spec((LW, th), lambda i, h: (0, h), w_single),   # W1 tile (block-diag, bf16)
        _spec((1, th), lambda i, h: (0, h), w_single),    # b1 tile
        _spec((th, LW), lambda i, h: (h, 0), w_single),   # W2 tile (block-diag, bf16)
        _spec((1, LW), lambda i, h: (0, 0), True),        # b2 (tiled)
        _spec((LW, G), lambda i, h: (0, 0), True),        # segment matrix
        _spec((G, LW), lambda i, h: (0, 0), True),        # segment matrix (transposed)
    ]

    cost = pl.CostEstimate(
        flops=int(4 * rows_g * LW * GH_pad
                  + (16 * rows_g * LW * G if (use_layernorm and G > 1) else 0)
                  + 10 * rows_g * LW),
        transcendentals=int(rows_g * G) if use_layernorm else 0,
        bytes_accessed=int(2 * rows_g * LW * bpe                    # x read + out write
                           + 2 * LW * GH_pad * wbpe * (grid_rows if n_h > 1 else 1)
                           + (4 * LW + GH_pad + 2 * LW * G) * 4),
    )

    out_g = pl.pallas_call(
        kernel,
        out_shape=jax.ShapeDtypeStruct((rows_g, LW), out_dtype),
        grid_spec=pltpu.PrefetchScalarGridSpec(
            num_scalar_prefetch=0,
            grid=(grid_rows, n_h),
            in_specs=in_specs,
            out_specs=pl.BlockSpec((bg, LW), lambda i, h: (i, 0)),
            scratch_shapes=[pltpu.VMEM((bg, LW), matmul_dtype),    # cached LayerNorm out
                            pltpu.VMEM((bg, LW), jnp.float32)],    # f32 accumulator
        ),
        compiler_params=pltpu.CompilerParams(
            dimension_semantics=("parallel", "arbitrary"),
            vmem_limit_bytes=vmem_limit),
        cost_estimate=cost,
    )(xg, gamma_t, beta_t, w1_blk, b1_t, w2_blk, b2_t, seg, segT)

    out2d = out_g.reshape(rows_full, D)
    if rows_full != rows:
        out2d = out2d[:rows]
    return out2d.reshape(S, B, D)


if __name__ == "__main__":
    # Small shapes consistent with the module: res_dim=32, inner_dim=64,
    # x: [seq=8, batch=2, res_dim=32]
    S, B, D, H = 8, 2, 32, 64
    key = jax.random.PRNGKey(0)
    kx, kg, kb, kw1, kb1, kw2, kb2 = jax.random.split(key, 7)

    x = jax.random.normal(kx, (S, B, D), dtype=jnp.float32)

    # Deterministic synthetic parameters (shapes from nn.Linear / nn.LayerNorm).
    gamma = 1.0 + 0.1 * jax.random.normal(kg, (D,), dtype=jnp.float32)
    beta = 0.1 * jax.random.normal(kb, (D,), dtype=jnp.float32)
    w1 = jax.random.normal(kw1, (D, H), dtype=jnp.float32) / jnp.sqrt(D)
    b1 = 0.01 * jax.random.normal(kb1, (H,), dtype=jnp.float32)
    w2 = jax.random.normal(kw2, (H, D), dtype=jnp.float32) / jnp.sqrt(H)
    b2 = 0.01 * jax.random.normal(kb2, (D,), dtype=jnp.float32)

    out = transformer_ff_layers(x, gamma, beta, w1, b1, w2, b2,
                                use_layernorm=True, use_res=True)
    jax.block_until_ready(out)

    # Pure-JAX reference mirroring the kernel's contract (f32 LayerNorm, bf16 matmul
    # operands with f32 accumulation) so the tolerance stays tight. NOTE for users:
    # results intentionally differ from a pure-f32 PyTorch reference at ~1e-3 level.
    def ref(xx):
        mu = jnp.mean(xx, axis=-1, keepdims=True)
        var = jnp.mean((xx - mu) ** 2, axis=-1, keepdims=True)
        xn = (xx - mu) * lax.rsqrt(var + 1e-5) * gamma + beta
        h = jnp.dot(xn.astype(jnp.bfloat16), w1.astype(jnp.bfloat16),
                    preferred_element_type=jnp.float32) + b1
        h = jnp.maximum(h, 0.0)
        y = jnp.dot(h.astype(jnp.bfloat16), w2.astype(jnp.bfloat16),
                    preferred_element_type=jnp.float32) + b2
        return y + xx

    r = ref(x)
    assert out.shape == x.shape and out.dtype == x.dtype
    assert jnp.allclose(out, r, atol=2e-3, rtol=2e-3), "mismatch vs reference"
    print("KERNEL_OK")
</pallas_src>

<mosaic_0001>
module attributes {stable_mosaic.version = 11 : i64} {
  func.func @_ff_kernel(%arg0: i32, %arg1: i32, %arg2: memref<4x128xf32, #tpu.memory_space<vmem>>, %arg3: memref<1x128xf32, #tpu.memory_space<vmem>>, %arg4: memref<1x128xf32, #tpu.memory_space<vmem>>, %arg5: memref<128x256xbf16, #tpu.memory_space<vmem>>, %arg6: memref<1x256xf32, #tpu.memory_space<vmem>>, %arg7: memref<256x128xbf16, #tpu.memory_space<vmem>>, %arg8: memref<1x128xf32, #tpu.memory_space<vmem>>, %arg9: memref<128x4xf32, #tpu.memory_space<vmem>>, %arg10: memref<4x128xf32, #tpu.memory_space<vmem>>, %arg11: memref<4x128xf32, #tpu.memory_space<vmem>>, %arg12: memref<4x128xbf16, #tpu.memory_space<vmem>>, %arg13: memref<4x128xf32, #tpu.memory_space<vmem>>) attributes {dimension_semantics = [#tpu.dimension_semantics<parallel>, #tpu.dimension_semantics<arbitrary>], iteration_bounds = array<i64: 1, 1>, scalar_prefetch = 0 : i64, scratch_operands = 2 : i64, tpu.core_type = #tpu.core_type<tc>, window_params = [{transform_indices = @transform_0, window_bounds = array<i64: 4, 128>}, {pipeline_mode = #tpu.pipeline_mode<synchronous>, transform_indices = @transform_1, window_bounds = array<i64: 1, 128>}, {pipeline_mode = #tpu.pipeline_mode<synchronous>, transform_indices = @transform_2, window_bounds = array<i64: 1, 128>}, {pipeline_mode = #tpu.pipeline_mode<synchronous>, transform_indices = @transform_3, window_bounds = array<i64: 128, 256>}, {pipeline_mode = #tpu.pipeline_mode<synchronous>, transform_indices = @transform_4, window_bounds = array<i64: 1, 256>}, {pipeline_mode = #tpu.pipeline_mode<synchronous>, transform_indices = @transform_5, window_bounds = array<i64: 256, 128>}, {pipeline_mode = #tpu.pipeline_mode<synchronous>, transform_indices = @transform_6, window_bounds = array<i64: 1, 128>}, {pipeline_mode = #tpu.pipeline_mode<synchronous>, transform_indices = @transform_7, window_bounds = array<i64: 128, 4>}, {pipeline_mode = #tpu.pipeline_mode<synchronous>, transform_indices = @transform_8, window_bounds = array<i64: 4, 128>}, {transform_indices = @transform_9, window_bounds = array<i64: 4, 128>}]} {
    %c0_i32 = arith.constant 0 : i32
    %0 = arith.cmpi eq, %arg1, %c0_i32 : i32
    %1 = arith.extui %0 : i1 to i32
    %c0_i32_0 = arith.constant 0 : i32
    %2 = arith.cmpi ne, %1, %c0_i32_0 : i32
    scf.if %2 {
      %c0_16 = arith.constant 0 : index
      %c0_17 = arith.constant 0 : index
      %20 = vector.load %arg2[%c0_16, %c0_17] : memref<4x128xf32, #tpu.memory_space<vmem>>, vector<4x128xf32>
      %c0_18 = arith.constant 0 : index
      %c0_19 = arith.constant 0 : index
      %21 = vector.load %arg9[%c0_18, %c0_19] : memref<128x4xf32, #tpu.memory_space<vmem>>, vector<128x4xf32>
      %c0_20 = arith.constant 0 : index
      %c0_21 = arith.constant 0 : index
      %22 = vector.load %arg10[%c0_20, %c0_21] : memref<4x128xf32, #tpu.memory_space<vmem>>, vector<4x128xf32>
      %cst_22 = arith.constant dense<0.000000e+00> : vector<4x4xf32>
      %23 = tpu.matmul %20, %21, %cst_22 {dimension_numbers = #tpu.dot_dimension_numbers<[1], [0], [0], [1], [0, 0, 1, 1], [], []>} : vector<4x128xf32>, vector<128x4xf32>, vector<4x4xf32> -> vector<4x4xf32>
      %24 = arith.mulf %20, %20 : vector<4x128xf32>
      %cst_23 = arith.constant dense<0.000000e+00> : vector<4x4xf32>
      %25 = tpu.matmul %24, %21, %cst_23 {dimension_numbers = #tpu.dot_dimension_numbers<[1], [0], [0], [1], [0, 0, 1, 1], [], []>} : vector<4x128xf32>, vector<128x4xf32>, vector<4x4xf32> -> vector<4x4xf32>
      %cst_24 = arith.constant 3.125000e-02 : f32
      %26 = vector.broadcast %cst_24 : f32 to vector<4x4xf32>
      %27 = arith.mulf %23, %26 : vector<4x4xf32>
      %cst_25 = arith.constant 3.125000e-02 : f32
      %28 = vector.broadcast %cst_25 : f32 to vector<4x4xf32>
      %29 = arith.mulf %25, %28 : vector<4x4xf32>
      %30 = arith.mulf %27, %27 : vector<4x4xf32>
      %31 = arith.subf %29, %30 : vector<4x4xf32>
      %cst_26 = arith.constant 9.99999974E-6 : f32
      %32 = vector.broadcast %cst_26 : f32 to vector<4x4xf32>
      %33 = arith.addf %31, %32 : vector<4x4xf32>
      %34 = math.rsqrt %33 : vector<4x4xf32>
      %cst_27 = arith.constant 0.000000e+00 : f32
      %35 = vector.broadcast %cst_27 : f32 to vector<4x4xf32>
      %36 = arith.subf %35, %27 : vector<4x4xf32>
      %37 = arith.mulf %36, %34 : vector<4x4xf32>
      %cst_28 = arith.constant dense<0.000000e+00> : vector<4x128xf32>
      %38 = tpu.matmul %34, %22, %cst_28 {dimension_numbers = #tpu.dot_dimension_numbers<[1], [0], [0], [1], [0, 0, 1, 1], [], []>} : vector<4x4xf32>, vector<4x128xf32>, vector<4x128xf32> -> vector<4x128xf32>
      %39 = arith.mulf %20, %38 : vector<4x128xf32>
      %cst_29 = arith.constant dense<0.000000e+00> : vector<4x128xf32>
      %40 = tpu.matmul %37, %22, %cst_29 {dimension_numbers = #tpu.dot_dimension_numbers<[1], [0], [0], [1], [0, 0, 1, 1], [], []>} : vector<4x4xf32>, vector<4x128xf32>, vector<4x128xf32> -> vector<4x128xf32>
      %41 = arith.addf %39, %40 : vector<4x128xf32>
      %c0_30 = arith.constant 0 : index
      %c0_31 = arith.constant 0 : index
      %42 = vector.load %arg3[%c0_30, %c0_31] : memref<1x128xf32, #tpu.memory_space<vmem>>, vector<1x128xf32>
      %43 = vector.broadcast %42 : vector<1x128xf32> to vector<4x128xf32>
      %44 = arith.mulf %41, %43 : vector<4x128xf32>
      %c0_32 = arith.constant 0 : index
      %c0_33 = arith.constant 0 : index
      %45 = vector.load %arg4[%c0_32, %c0_33] : memref<1x128xf32, #tpu.memory_space<vmem>>, vector<1x128xf32>
      %46 = vector.broadcast %45 : vector<1x128xf32> to vector<4x128xf32>
      %47 = arith.addf %44, %46 : vector<4x128xf32>
      %48 = arith.truncf %47 : vector<4x128xf32> to vector<4x128xbf16>
      %c0_34 = arith.constant 0 : index
      %c0_35 = arith.constant 0 : index
      %49 = vector.load %arg12[%c0_34, %c0_35] : memref<4x128xbf16, #tpu.memory_space<vmem>>, vector<4x128xbf16>
      tpu.vector_store %arg12[%c0_34, %c0_35], %48 {strides = array<i32>} : memref<4x128xbf16, #tpu.memory_space<vmem>>, vector<4x128xbf16>,
      %cst_36 = arith.constant 0.000000e+00 : f32
      %50 = vector.broadcast %cst_36 : f32 to vector<4x128xf32>
      %c0_37 = arith.constant 0 : index
      %c0_38 = arith.constant 0 : index
      %51 = vector.load %arg13[%c0_37, %c0_38] : memref<4x128xf32, #tpu.memory_space<vmem>>, vector<4x128xf32>
      tpu.vector_store %arg13[%c0_37, %c0_38], %50 {strides = array<i32>} : memref<4x128xf32, #tpu.memory_space<vmem>>, vector<4x128xf32>,
    } else {
    }
    %c0 = arith.constant 0 : index
    %c0_1 = arith.constant 0 : index
    %3 = vector.load %arg12[%c0, %c0_1] : memref<4x128xbf16, #tpu.memory_space<vmem>>, vector<4x128xbf16>
    %c0_2 = arith.constant 0 : index
    %c0_3 = arith.constant 0 : index
    %4 = vector.load %arg5[%c0_2, %c0_3] : memref<128x256xbf16, #tpu.memory_space<vmem>>, vector<128x256xbf16>
    %cst = arith.constant dense<0.000000e+00> : vector<4x256xf32>
    %5 = tpu.matmul %3, %4, %cst {dimension_numbers = #tpu.dot_dimension_numbers<[1], [0], [0], [1], [0, 0, 1, 1], [], []>} : vector<4x128xbf16>, vector<128x256xbf16>, vector<4x256xf32> -> vector<4x256xf32>
    %c0_4 = arith.constant 0 : index
    %c0_5 = arith.constant 0 : index
    %6 = vector.load %arg6[%c0_4, %c0_5] : memref<1x256xf32, #tpu.memory_space<vmem>>, vector<1x256xf32>
    %7 = vector.broadcast %6 : vector<1x256xf32> to vector<4x256xf32>
    %8 = arith.addf %5, %7 : vector<4x256xf32>
    %cst_6 = arith.constant 0.000000e+00 : f32
    %9 = vector.broadcast %cst_6 : f32 to vector<4x256xf32>
    %10 = arith.maximumf %8, %9 : vector<4x256xf32>
    %c0_7 = arith.constant 0 : index
    %c0_8 = arith.constant 0 : index
    %11 = vector.load %arg13[%c0_7, %c0_8] : memref<4x128xf32, #tpu.memory_space<vmem>>, vector<4x128xf32>
    %12 = arith.truncf %10 : vector<4x256xf32> to vector<4x256xbf16>
    %c0_9 = arith.constant 0 : index
    %c0_10 = arith.constant 0 : index
    %13 = vector.load %arg7[%c0_9, %c0_10] : memref<256x128xbf16, #tpu.memory_space<vmem>>, vector<256x128xbf16>
    %cst_11 = arith.constant dense<0.000000e+00> : vector<4x128xf32>
    %14 = tpu.matmul %12, %13, %cst_11 {dimension_numbers = #tpu.dot_dimension_numbers<[1], [0], [0], [1], [0, 0, 1, 1], [], []>} : vector<4x256xbf16>, vector<256x128xbf16>, vector<4x128xf32> -> vector<4x128xf32>
    %15 = arith.addf %11, %14 : vector<4x128xf32>
    %c0_12 = arith.constant 0 : index
    %c0_13 = arith.constant 0 : index
    %16 = vector.load %arg13[%c0_12, %c0_13] : memref<4x128xf32, #tpu.memory_space<vmem>>, vector<4x128xf32>
    tpu.vector_store %arg13[%c0_12, %c0_13], %15 {strides = array<i32>} : memref<4x128xf32, #tpu.memory_space<vmem>>, vector<4x128xf32>,
    %c0_i32_14 = arith.constant 0 : i32
    %17 = arith.cmpi eq, %arg1, %c0_i32_14 : i32
    %18 = arith.extui %17 : i1 to i32
    %c0_i32_15 = arith.constant 0 : i32
    %19 = arith.cmpi ne, %18, %c0_i32_15 : i32
    scf.if %19 {
      %c0_16 = arith.constant 0 : index
      %c0_17 = arith.constant 0 : index
      %20 = vector.load %arg13[%c0_16, %c0_17] : memref<4x128xf32, #tpu.memory_space<vmem>>, vector<4x128xf32>
      %c0_18 = arith.constant 0 : index
      %c0_19 = arith.constant 0 : index
      %21 = vector.load %arg8[%c0_18, %c0_19] : memref<1x128xf32, #tpu.memory_space<vmem>>, vector<1x128xf32>
      %22 = vector.broadcast %21 : vector<1x128xf32> to vector<4x128xf32>
      %23 = arith.addf %20, %22 : vector<4x128xf32>
      %c0_20 = arith.constant 0 : index
      %c0_21 = arith.constant 0 : index
      %24 = vector.load %arg2[%c0_20, %c0_21] : memref<4x128xf32, #tpu.memory_space<vmem>>, vector<4x128xf32>
      %25 = arith.addf %23, %24 : vector<4x128xf32>
      %c0_22 = arith.constant 0 : index
      %c0_23 = arith.constant 0 : index
      %26 = vector.load %arg11[%c0_22, %c0_23] : memref<4x128xf32, #tpu.memory_space<vmem>>, vector<4x128xf32>
      tpu.vector_store %arg11[%c0_22, %c0_23], %25 {strides = array<i32>} : memref<4x128xf32, #tpu.memory_space<vmem>>, vector<4x128xf32>,
    } else {
    }
    return
  }
  func.func @transform_0(%arg0: i32, %arg1: i32) -> (i32, i32) {
    %c0_i32 = arith.constant 0 : i32
    %c0_i32_0 = arith.constant 0 : i32
    return %arg0, %c0_i32 : i32, i32
  }
  func.func @transform_1(%arg0: i32, %arg1: i32) -> (i32, i32) {
    %c0_i32 = arith.constant 0 : i32
    %c0_i32_0 = arith.constant 0 : i32
    %c0_i32_1 = arith.constant 0 : i32
    return %c0_i32, %c0_i32_0 : i32, i32
  }
  func.func @transform_2(%arg0: i32, %arg1: i32) -> (i32, i32) {
    %c0_i32 = arith.constant 0 : i32
    %c0_i32_0 = arith.constant 0 : i32
    %c0_i32_1 = arith.constant 0 : i32
    return %c0_i32, %c0_i32_0 : i32, i32
  }
  func.func @transform_3(%arg0: i32, %arg1: i32) -> (i32, i32) {
    %c0_i32 = arith.constant 0 : i32
    %c0_i32_0 = arith.constant 0 : i32
    return %c0_i32, %arg1 : i32, i32
  }
  func.func @transform_4(%arg0: i32, %arg1: i32) -> (i32, i32) {
    %c0_i32 = arith.constant 0 : i32
    %c0_i32_0 = arith.constant 0 : i32
    return %c0_i32, %arg1 : i32, i32
  }
  func.func @transform_5(%arg0: i32, %arg1: i32) -> (i32, i32) {
    %c0_i32 = arith.constant 0 : i32
    %c0_i32_0 = arith.constant 0 : i32
    return %arg1, %c0_i32 : i32, i32
  }
  func.func @transform_6(%arg0: i32, %arg1: i32) -> (i32, i32) {
    %c0_i32 = arith.constant 0 : i32
    %c0_i32_0 = arith.constant 0 : i32
    %c0_i32_1 = arith.constant 0 : i32
    return %c0_i32, %c0_i32_0 : i32, i32
  }
  func.func @transform_7(%arg0: i32, %arg1: i32) -> (i32, i32) {
    %c0_i32 = arith.constant 0 : i32
    %c0_i32_0 = arith.constant 0 : i32
    %c0_i32_1 = arith.constant 0 : i32
    return %c0_i32, %c0_i32_0 : i32, i32
  }
  func.func @transform_8(%arg0: i32, %arg1: i32) -> (i32, i32) {
    %c0_i32 = arith.constant 0 : i32
    %c0_i32_0 = arith.constant 0 : i32
    %c0_i32_1 = arith.constant 0 : i32
    return %c0_i32, %c0_i32_0 : i32, i32
  }
  func.func @transform_9(%arg0: i32, %arg1: i32) -> (i32, i32) {
    %c0_i32 = arith.constant 0 : i32
    %c0_i32_0 = arith.constant 0 : i32
    return %arg0, %c0_i32 : i32, i32
  }
}

</mosaic_0001>

<llo_original>
// kernel: tpu_custom_call.1
$region0: #{tpu_custom_call.1}
  #allocation0 [shape = 'u32[]', space=smem, size = 0x4, offset = 0x4, fixed_abs, tag = 'smem constant byte address 0x4 - core index']
  #allocation1 [shape = 'u32[144,128]{1,0:T(1,128)}', space=vmem, size = 0x12000, scoped, tag = 'internal scratch']
  #allocation2 [shape = 'bf16[4,128]{1,0:T(4,128)(2,1)}', space=vmem, size = 0x400, scoped, tag = 'scratch operand']
  #allocation3 [shape = 'f32[4,128]{1,0:T(4,128)}', space=vmem, size = 0x800, scoped, tag = 'scratch operand']
  %s0 = inlined_call_operand.vmem [shape: f32[4,128], index: 0, kind: input, shape index: {}]
  %s1 = inlined_call_operand.vmem [shape: f32[1,128], index: 1, kind: input, shape index: {}]
  %s2 = inlined_call_operand.vmem [shape: f32[1,128], index: 2, kind: input, shape index: {}]
  %s3 = inlined_call_operand.vmem [shape: bf16[128,256], index: 3, kind: input, shape index: {}]
  %s4 = inlined_call_operand.vmem [shape: f32[1,256], index: 4, kind: input, shape index: {}]
  %s5 = inlined_call_operand.hbm [shape: bf16[256,128], index: 5, kind: input, shape index: {}]
  %s6 = inlined_call_operand.vmem [shape: f32[1,128], index: 6, kind: input, shape index: {}]
  %s7 = inlined_call_operand.vmem [shape: f32[128,4], index: 7, kind: input, shape index: {}]
  %s8 = inlined_call_operand.vmem [shape: f32[4,128], index: 8, kind: input, shape index: {}]
  %s9 = inlined_call_operand.hbm [shape: f32[4,128], index: 9, kind: output, shape index: {}]
  %s10 = sld [smem:[#allocation0]]
  $region58: #{tpu_custom_call.1} parent=0
    _
  %s12 = ssub.s32 1, %s10
  %s13 = scalar_select 0, %s12, %s10
  $region1: #{tpu_custom_call.1} parent=0
    #allocation4 [shape = 'u8[65536]{0}', space=vmem, size = 0x10000, scoped, tag = 'input window, operand 5, single buffered']
    #allocation5 [shape = 's32[1]{0}', space=sflag, size = 0x4, scoped, tag = 'scoped memory for tpu_custom_call.1']
    #allocation6 [shape = 's32[1]{0}', space=sflag, size = 0x4, scoped, tag = 'scoped memory for tpu_custom_call.1']
    #allocation7 [shape = 'u8[2048]{0}', space=vmem, size = 0x800, scoped, tag = 'output window, operand 0, single buffered']
    %14 = vsyncpa [#allocation5], 0
    %15 = vsyncpa [#allocation6], 0
    // Predicated region
    $region2: #{tpu_custom_call.1} parent=1 // pred_check
      _
    $region3: #{tpu_custom_call.1} parent=1 // pred_check_branch
      %17 = sbr.rel (0) target = $region5
    $region4: #{tpu_custom_call.1} parent=1 // pred_region
      _
    $region5: #{tpu_custom_call.1} parent=1 // pred_fallthru
      _
    // Predicated region
    $region6: #{tpu_custom_call.1} parent=1 // pred_check
      _
    $region7: #{tpu_custom_call.1} parent=1 // pred_check_branch
      %19 = sbr.rel (0) target = $region9
    $region8: #{tpu_custom_call.1} parent=1 // pred_region
      _
    $region9: #{tpu_custom_call.1} parent=1 // pred_fallthru
      _
    // Predicated region
    $region10: #{tpu_custom_call.1} parent=1 // pred_check
      _
    $region11: #{tpu_custom_call.1} parent=1 // pred_check_branch
      %21 = sbr.rel (0) target = $region13
    $region12: #{tpu_custom_call.1} parent=1 // pred_region
      _
    $region13: #{tpu_custom_call.1} parent=1 // pred_fallthru
      _
    // Predicated region
    $region14: #{tpu_custom_call.1} parent=1 // pred_check
      _
    $region15: #{tpu_custom_call.1} parent=1 // pred_check_branch
      %23 = sbr.rel (0) target = $region17
    $region16: #{tpu_custom_call.1} parent=1 // pred_region
      _
    $region17: #{tpu_custom_call.1} parent=1 // pred_fallthru
      _
    // Predicated region
    $region18: #{tpu_custom_call.1} parent=1 // pred_check
      _
    $region19: #{tpu_custom_call.1} parent=1 // pred_check_branch
      %25 = sbr.rel (0) target = $region21
    $region20: #{tpu_custom_call.1} parent=1 // pred_region
      _
    $region21: #{tpu_custom_call.1} parent=1 // pred_fallthru
      _
    // Predicated region
    $region22: #{tpu_custom_call.1} parent=1 // pred_check
      _
    $region23: #{tpu_custom_call.1} parent=1 // pred_check_branch
      %27 = sbr.rel (0) target = $region25
    $region24: #{tpu_custom_call.1} parent=1 // pred_region
      %s29 = ssub.s32 2048, 2048
      %30 = vsyncadd [#allocation5], %s29
      %s31 = sshll.u32 [#allocation4], 4
      %s32 = int_to_ptr.vmem [resolvable:$true] %s31
      %37 = dma.hbm_to_vmem [thread:$0]  %s5, 2048, %s32, [#allocation5], 64, 64, 4
    $region25: #{tpu_custom_call.1} parent=1 // pred_fallthru
      _
    // Predicated region
    $region26: #{tpu_custom_call.1} parent=1 // pred_check
      _
    $region27: #{tpu_custom_call.1} parent=1 // pred_check_branch
      %39 = sbr.rel (0) target = $region29
    $region28: #{tpu_custom_call.1} parent=1 // pred_region
      _
    $region29: #{tpu_custom_call.1} parent=1 // pred_fallthru
      _
    // Predicated region
    $region30: #{tpu_custom_call.1} parent=1 // pred_check
      _
    $region31: #{tpu_custom_call.1} parent=1 // pred_check_branch
      %41 = sbr.rel (0) target = $region33
    $region32: #{tpu_custom_call.1} parent=1 // pred_region
      _
    $region33: #{tpu_custom_call.1} parent=1 // pred_fallthru
      _
    // Predicated region
    $region34: #{tpu_custom_call.1} parent=1 // pred_check
      _
    $region35: #{tpu_custom_call.1} parent=1 // pred_check_branch
      %43 = sbr.rel (0) target = $region37
    $region36: #{tpu_custom_call.1} parent=1 // pred_region
      _
    $region37: #{tpu_custom_call.1} parent=1 // pred_fallthru
      _
    // Predicated region
    $region38: #{tpu_custom_call.1} parent=1 // pred_check
      _
    $region39: #{tpu_custom_call.1} parent=1 // pred_check_branch
      %45 = sbr.rel (0) target = $region41
    $region40: #{tpu_custom_call.1} parent=1 // pred_region
      %46 = dma.done [#allocation5], 2048
    $region41: #{tpu_custom_call.1} parent=1 // pred_fallthru
      _
    %p48 = scmp.eq.s32.totalorder 0, 0
    // Predicated region
    $region42: #{tpu_custom_call.1} parent=1 // pred_check
      %p49 = pneg %p48
    $region43: #{tpu_custom_call.1} parent=1 // pred_check_branch
      %51 = sbr.rel (%p49) target = $region45
    $region44: #{tpu_custom_call.1} parent=1 // pred_region
      %v52 = vld [vmem:[%s0] sm:$0xf]
      %v53 = vld [vmem:[%s7] sm:$0xff]
      %v54 = vld [vmem:[%s7 + $0x8] sm:$0xff]
      %v55 = vld [vmem:[%s7 + $0x10] sm:$0xff]
      %v56 = vld [vmem:[%s7 + $0x18] sm:$0xff]
      %v57 = vld [vmem:[%s7 + $0x20] sm:$0xff]
      %v58 = vld [vmem:[%s7 + $0x28] sm:$0xff]
      %v59 = vld [vmem:[%s7 + $0x30] sm:$0xff]
      %v60 = vld [vmem:[%s7 + $0x38] sm:$0xff]
      %v61 = vld [vmem:[%s7 + $0x40] sm:$0xff]
      %v62 = vld [vmem:[%s7 + $0x48] sm:$0xff]
      %v63 = vld [vmem:[%s7 + $0x50] sm:$0xff]
      %v64 = vld [vmem:[%s7 + $0x58] sm:$0xff]
      %v65 = vld [vmem:[%s7 + $0x60] sm:$0xff]
      %v66 = vld [vmem:[%s7 + $0x68] sm:$0xff]
      %v67 = vld [vmem:[%s7 + $0x70] sm:$0xff]
      %v68 = vld [vmem:[%s7 + $0x78] sm:$0xff]
      %v69 = vld [vmem:[%s8] sm:$0xf]
      %70 = vmatprep.subr.mxu0 0.0
      %71 = vmatpush1.msra.mxu0 %v53
      %72 = vmatprep.subr.mxu0 0.0
      %73 = vmatpush1.msra.mxu0 %v54
      %74 = vmatprep.subr.mxu0 0.0
      %75 = vmatpush1.msra.mxu0 %v55
      %76 = vmatprep.subr.mxu0 0.0
      %77 = vmatpush1.msra.mxu0 %v56
      %78 = vmatprep.subr.mxu0 0.0
      %79 = vmatpush1.msra.mxu0 %v57
      %80 = vmatprep.subr.mxu0 0.0
      %81 = vmatpush1.msra.mxu0 %v58
      %82 = vmatprep.subr.mxu0 0.0
      %83 = vmatpush1.msra.mxu0 %v59
      %84 = vmatprep.subr.mxu0 0.0
      %85 = vmatpush1.msra.mxu0 %v60
      %86 = vmatprep.subr.mxu0 0.0
      %87 = vmatpush1.msra.mxu0 %v61
      %88 = vmatprep.subr.mxu0 0.0
      %89 = vmatpush1.msra.mxu0 %v62
      %90 = vmatprep.subr.mxu0 0.0
      %91 = vmatpush1.msra.mxu0 %v63
      %92 = vmatprep.subr.mxu0 0.0
      %93 = vmatpush1.msra.mxu0 %v64
      %94 = vmatprep.subr.mxu0 0.0
      %95 = vmatpush1.msra.mxu0 %v65
      %96 = vmatprep.subr.mxu0 0.0
      %97 = vmatpush1.msra.mxu0 %v66
      %98 = vmatprep.subr.mxu0 0.0
      %99 = vmatpush1.msra.mxu0 %v67
      %100 = vmatprep.subr.mxu0 0.0
      %101 = vmatpush1.msra.mxu0 %v68
      %102 = vmatprep.subr.mxu0 0.0
      %103 = vmatpush1.msra.mxu0 0.0
      %104 = vmatprep.subr.mxu0 0.0
      %105 = vmatpush1.msra.mxu0 0.0
      %106 = vmatprep.subr.mxu0 0.0
      %107 = vmatpush1.msra.mxu0 0.0
      %108 = vmatprep.subr.mxu0 0.0
      %109 = vmatpush1.msra.mxu0 0.0
      %110 = vmatprep.subr.mxu0 0.0
      %111 = vmatpush1.msra.mxu0 0.0
      %112 = vmatprep.subr.mxu0 0.0
      %113 = vmatpush1.msra.mxu0 0.0
      %114 = vmatprep.subr.mxu0 0.0
      %115 = vmatpush1.msra.mxu0 0.0
      %116 = vmatprep.subr.mxu0 0.0
      %117 = vmatpush1.msra.mxu0 0.0
      %118 = vmatprep.subr.mxu0 0.0
      %119 = vmatpush1.msra.mxu0 0.0
      %120 = vmatprep.subr.mxu0 0.0
      %121 = vmatpush1.msra.mxu0 0.0
      %122 = vmatprep.subr.mxu0 0.0
      %123 = vmatpush1.msra.mxu0 0.0
      %124 = vmatprep.subr.mxu0 0.0
      %125 = vmatpush1.msra.mxu0 0.0
      %126 = vmatprep.subr.mxu0 0.0
      %127 = vmatpush1.msra.mxu0 0.0
      %128 = vmatprep.subr.mxu0 0.0
      %129 = vmatpush1.msra.mxu0 0.0
      %130 = vmatprep.subr.mxu0 0.0
      %131 = vmatpush1.msra.mxu0 0.0
      %132 = vmatprep.subr.mxu0 0.0
      %133 = vmatpush1.msra.mxu0 0.0
      %134 = vmatprep.mubr.f32.mxu0 0.0
      %135 = vmatmul.mubr.f32.gmra.mrb[0].mxu0 %v52
      %v136 = vpop.f32.mrb[0].mxu0
      %v137 = vadd.f32 0.0, %v136
      %v138 = vpop.f32.mrb[0].mxu0
      %139 = vdwg.mxu0
      %v140 = vmul.f32 %v52, %v52
      %141 = vmatprep.subr.mxu0 0.0
      %142 = vmatpush1.msra.mxu0 %v53
      %143 = vmatprep.subr.mxu0 0.0
      %144 = vmatpush1.msra.mxu0 %v54
      %145 = vmatprep.subr.mxu0 0.0
      %146 = vmatpush1.msra.mxu0 %v55
      %147 = vmatprep.subr.mxu0 0.0
      %148 = vmatpush1.msra.mxu0 %v56
      %149 = vmatprep.subr.mxu0 0.0
      %150 = vmatpush1.msra.mxu0 %v57
      %151 = vmatprep.subr.mxu0 0.0
      %152 = vmatpush1.msra.mxu0 %v58
      %153 = vmatprep.subr.mxu0 0.0
      %154 = vmatpush1.msra.mxu0 %v59
      %155 = vmatprep.subr.mxu0 0.0
      %156 = vmatpush1.msra.mxu0 %v60
      %157 = vmatprep.subr.mxu0 0.0
      %158 = vmatpush1.msra.mxu0 %v61
      %159 = vmatprep.subr.mxu0 0.0
      %160 = vmatpush1.msra.mxu0 %v62
      %161 = vmatprep.subr.mxu0 0.0
      %162 = vmatpush1.msra.mxu0 %v63
      %163 = vmatprep.subr.mxu0 0.0
      %164 = vmatpush1.msra.mxu0 %v64
      %165 = vmatprep.subr.mxu0 0.0
      %166 = vmatpush1.msra.mxu0 %v65
      %167 = vmatprep.subr.mxu0 0.0
      %168 = vmatpush1.msra.mxu0 %v66
      %169 = vmatprep.subr.mxu0 0.0
      %170 = vmatpush1.msra.mxu0 %v67
      %171 = vmatprep.subr.mxu0 0.0
      %172 = vmatpush1.msra.mxu0 %v68
      %173 = vmatprep.subr.mxu0 0.0
      %174 = vmatpush1.msra.mxu0 0.0
      %175 = vmatprep.subr.mxu0 0.0
      %176 = vmatpush1.msra.mxu0 0.0
      %177 = vmatprep.subr.mxu0 0.0
      %178 = vmatpush1.msra.mxu0 0.0
      %179 = vmatprep.subr.mxu0 0.0
      %180 = vmatpush1.msra.mxu0 0.0
      %181 = vmatprep.subr.mxu0 0.0
      %182 = vmatpush1.msra.mxu0 0.0
      %183 = vmatprep.subr.mxu0 0.0
      %184 = vmatpush1.msra.mxu0 0.0
      %185 = vmatprep.subr.mxu0 0.0
      %186 = vmatpush1.msra.mxu0 0.0
      %187 = vmatprep.subr.mxu0 0.0
      %188 = vmatpush1.msra.mxu0 0.0
      %189 = vmatprep.subr.mxu0 0.0
      %190 = vmatpush1.msra.mxu0 0.0
      %191 = vmatprep.subr.mxu0 0.0
      %192 = vmatpush1.msra.mxu0 0.0
      %193 = vmatprep.subr.mxu0 0.0
      %194 = vmatpush1.msra.mxu0 0.0
      %195 = vmatprep.subr.mxu0 0.0
      %196 = vmatpush1.msra.mxu0 0.0
      %197 = vmatprep.subr.mxu0 0.0
      %198 = vmatpush1.msra.mxu0 0.0
      %199 = vmatprep.subr.mxu0 0.0
      %200 = vmatpush1.msra.mxu0 0.0
      %201 = vmatprep.subr.mxu0 0.0
      %202 = vmatpush1.msra.mxu0 0.0
      %203 = vmatprep.subr.mxu0 0.0
      %204 = vmatpush1.msra.mxu0 0.0
      %205 = vmatprep.mubr.f32.mxu0 0.0
      %206 = vmatmul.mubr.f32.gmra.mrb[0].mxu0 %v140
      %v207 = vpop.f32.mrb[0].mxu0
      %v208 = vadd.f32 0.0, %v207
      %v209 = vpop.f32.mrb[0].mxu0
      %210 = vdwg.mxu0
      %v211 = vmul.f32 %v137, 0.03125
      %v212 = vmul.f32 %v208, 0.03125
      %v213 = vmul.f32 %v211, %v211
      %v214 = vsub.f32 %v212, %v213
      %v215 = vadd.f32 %v214, 1e-05
      %v216 = vrsqrt.pop %v215
      %v217 = vsub.f32 0.0, %v211
      %v218 = vmul.f32 %v217, %v216
      %vm219 = vcmask 31744
      %v221 = vsel %vm219, %v216, 0
      %vm223 = vcmask 1043456
      %v225 = vsel %vm223, %v69, 0
      %227 = vmatprep.subr.mxu0 0.0
      %228 = vmatpush1.msra.mxu0 %v225
      %229 = vmatprep.subr.mxu0 0.0
      %230 = vmatpush1.msra.mxu0 0.0
      %231 = vmatprep.subr.mxu0 0.0
      %232 = vmatpush1.msra.mxu0 0.0
      %233 = vmatprep.subr.mxu0 0.0
      %234 = vmatpush1.msra.mxu0 0.0
      %235 = vmatprep.subr.mxu0 0.0
      %236 = vmatpush1.msra.mxu0 0.0
      %237 = vmatprep.subr.mxu0 0.0
      %238 = vmatpush1.msra.mxu0 0.0
      %239 = vmatprep.subr.mxu0 0.0
      %240 = vmatpush1.msra.mxu0 0.0
      %241 = vmatprep.subr.mxu0 0.0
      %242 = vmatpush1.msra.mxu0 0.0
      %243 = vmatprep.subr.mxu0 0.0
      %244 = vmatpush1.msra.mxu0 0.0
      %245 = vmatprep.subr.mxu0 0.0
      %246 = vmatpush1.msra.mxu0 0.0
      %247 = vmatprep.subr.mxu0 0.0
      %248 = vmatpush1.msra.mxu0 0.0
      %249 = vmatprep.subr.mxu0 0.0
      %250 = vmatpush1.msra.mxu0 0.0
      %251 = vmatprep.subr.mxu0 0.0
      %252 = vmatpush1.msra.mxu0 0.0
      %253 = vmatprep.subr.mxu0 0.0
      %254 = vmatpush1.msra.mxu0 0.0
      %255 = vmatprep.subr.mxu0 0.0
      %256 = vmatpush1.msra.mxu0 0.0
      %257 = vmatprep.subr.mxu0 0.0
      %258 = vmatpush1.msra.mxu0 0.0
      %259 = vmatprep.subr.mxu0 0.0
      %260 = vmatpush1.msra.mxu0 0.0
      %261 = vmatprep.subr.mxu0 0.0
      %262 = vmatpush1.msra.mxu0 0.0
      %263 = vmatprep.subr.mxu0 0.0
      %264 = vmatpush1.msra.mxu0 0.0
      %265 = vmatprep.subr.mxu0 0.0
      %266 = vmatpush1.msra.mxu0 0.0
      %267 = vmatprep.subr.mxu0 0.0
      %268 = vmatpush1.msra.mxu0 0.0
      %269 = vmatprep.subr.mxu0 0.0
      %270 = vmatpush1.msra.mxu0 0.0
      %271 = vmatprep.subr.mxu0 0.0
      %272 = vmatpush1.msra.mxu0 0.0
      %273 = vmatprep.subr.mxu0 0.0
      %274 = vmatpush1.msra.mxu0 0.0
      %275 = vmatprep.subr.mxu0 0.0
      %276 = vmatpush1.msra.mxu0 0.0
      %277 = vmatprep.subr.mxu0 0.0
      %278 = vmatpush1.msra.mxu0 0.0
      %279 = vmatprep.subr.mxu0 0.0
      %280 = vmatpush1.msra.mxu0 0.0
      %281 = vmatprep.subr.mxu0 0.0
      %282 = vmatpush1.msra.mxu0 0.0
      %283 = vmatprep.subr.mxu0 0.0
      %284 = vmatpush1.msra.mxu0 0.0
      %285 = vmatprep.subr.mxu0 0.0
      %286 = vmatpush1.msra.mxu0 0.0
      %287 = vmatprep.subr.mxu0 0.0
      %288 = vmatpush1.msra.mxu0 0.0
      %289 = vmatprep.subr.mxu0 0.0
      %290 = vmatpush1.msra.mxu0 0.0
      %291 = vmatprep.mubr.f32.mxu0 0.0
      %292 = vmatmul.mubr.f32.gmra.mrb[0].mxu0 %v221
      %v293 = vpop.f32.mrb[0].mxu0
      %v294 = vadd.f32 0.0, %v293
      %v295 = vpop.f32.mrb[0].mxu0
      %296 = vdwg.mxu0
      %v297 = vmul.f32 %v52, %v294
      %v299 = vsel %vm219, %v218, 0
      %301 = vmatprep.subr.mxu0 0.0
      %302 = vmatpush1.msra.mxu0 %v225
      %303 = vmatprep.subr.mxu0 0.0
      %304 = vmatpush1.msra.mxu0 0.0
      %305 = vmatprep.subr.mxu0 0.0
      %306 = vmatpush1.msra.mxu0 0.0
      %307 = vmatprep.subr.mxu0 0.0
      %308 = vmatpush1.msra.mxu0 0.0
      %309 = vmatprep.subr.mxu0 0.0
      %310 = vmatpush1.msra.mxu0 0.0
      %311 = vmatprep.subr.mxu0 0.0
      %312 = vmatpush1.msra.mxu0 0.0
      %313 = vmatprep.subr.mxu0 0.0
      %314 = vmatpush1.msra.mxu0 0.0
      %315 = vmatprep.subr.mxu0 0.0
      %316 = vmatpush1.msra.mxu0 0.0
      %317 = vmatprep.subr.mxu0 0.0
      %318 = vmatpush1.msra.mxu0 0.0
      %319 = vmatprep.subr.mxu0 0.0
      %320 = vmatpush1.msra.mxu0 0.0
      %321 = vmatprep.subr.mxu0 0.0
      %322 = vmatpush1.msra.mxu0 0.0
      %323 = vmatprep.subr.mxu0 0.0
      %324 = vmatpush1.msra.mxu0 0.0
      %325 = vmatprep.subr.mxu0 0.0
      %326 = vmatpush1.msra.mxu0 0.0
      %327 = vmatprep.subr.mxu0 0.0
      %328 = vmatpush1.msra.mxu0 0.0
      %329 = vmatprep.subr.mxu0 0.0
      %330 = vmatpush1.msra.mxu0 0.0
      %331 = vmatprep.subr.mxu0 0.0
      %332 = vmatpush1.msra.mxu0 0.0
      %333 = vmatprep.subr.mxu0 0.0
      %334 = vmatpush1.msra.mxu0 0.0
      %335 = vmatprep.subr.mxu0 0.0
      %336 = vmatpush1.msra.mxu0 0.0
      %337 = vmatprep.subr.mxu0 0.0
      %338 = vmatpush1.msra.mxu0 0.0
      %339 = vmatprep.subr.mxu0 0.0
      %340 = vmatpush1.msra.mxu0 0.0
      %341 = vmatprep.subr.mxu0 0.0
      %342 = vmatpush1.msra.mxu0 0.0
      %343 = vmatprep.subr.mxu0 0.0
      %344 = vmatpush1.msra.mxu0 0.0
      %345 = vmatprep.subr.mxu0 0.0
      %346 = vmatpush1.msra.mxu0 0.0
      %347 = vmatprep.subr.mxu0 0.0
      %348 = vmatpush1.msra.mxu0 0.0
      %349 = vmatprep.subr.mxu0 0.0
      %350 = vmatpush1.msra.mxu0 0.0
      %351 = vmatprep.subr.mxu0 0.0
      %352 = vmatpush1.msra.mxu0 0.0
      %353 = vmatprep.subr.mxu0 0.0
      %354 = vmatpush1.msra.mxu0 0.0
      %355 = vmatprep.subr.mxu0 0.0
      %356 = vmatpush1.msra.mxu0 0.0
      %357 = vmatprep.subr.mxu0 0.0
      %358 = vmatpush1.msra.mxu0 0.0
      %359 = vmatprep.subr.mxu0 0.0
      %360 = vmatpush1.msra.mxu0 0.0
      %361 = vmatprep.subr.mxu0 0.0
      %362 = vmatpush1.msra.mxu0 0.0
      %363 = vmatprep.subr.mxu0 0.0
      %364 = vmatpush1.msra.mxu0 0.0
      %365 = vmatprep.mubr.f32.mxu0 0.0
      %366 = vmatmul.mubr.f32.gmra.mrb[0].mxu0 %v299
      %v367 = vpop.f32.mrb[0].mxu0
      %v368 = vadd.f32 0.0, %v367
      %v369 = vpop.f32.mrb[0].mxu0
      %370 = vdwg.mxu0
      %v371 = vadd.f32 %v297, %v368
      %v372 = vld [vmem:[%s1] sm:$0x1]
      %v374 = vlaneseq
      %v375 = vshrl.u32 %v374, 7
      %v376 = vsub.s32 0, %v375
      %v377 = vrot.slane %v372, %v376
      %v379 = vmul.f32 %v371, %v377
      %v380 = vld [vmem:[%s2] sm:$0x1]
      %v382 = vlaneseq
      %v383 = vshrl.u32 %v382, 7
      %v384 = vsub.s32 0, %v383
      %v385 = vrot.slane %v380, %v384
      %v387 = vadd.f32 %v379, %v385
      %v388 = vpack.c.bf16 %v387, %v387
      %389 = vst [vmem:[#allocation2] sm:$0x3] %v388
      %390 = vst [vmem:[#allocation3] sm:$0xf] 0.0
    $region45: #{tpu_custom_call.1} parent=1 // pred_fallthru
      _
    %v391 = vld [vmem:[#allocation2] sm:$0x3]
    %v392 = vld [vmem:[%s3] sm:$0xff]
    %v393 = vld [vmem:[%s3 + $0x8] sm:$0xff]
    %v394 = vld [vmem:[%s3 + $0x10] sm:$0xff]
    %v395 = vld [vmem:[%s3 + $0x18] sm:$0xff]
    %v396 = vld [vmem:[%s3 + $0x20] sm:$0xff]
    %v397 = vld [vmem:[%s3 + $0x28] sm:$0xff]
    %v398 = vld [vmem:[%s3 + $0x30] sm:$0xff]
    %v399 = vld [vmem:[%s3 + $0x38] sm:$0xff]
    %v400 = vld [vmem:[%s3 + $0x40] sm:$0xff]
    %v401 = vld [vmem:[%s3 + $0x48] sm:$0xff]
    %v402 = vld [vmem:[%s3 + $0x50] sm:$0xff]
    %v403 = vld [vmem:[%s3 + $0x58] sm:$0xff]
    %v404 = vld [vmem:[%s3 + $0x60] sm:$0xff]
    %v405 = vld [vmem:[%s3 + $0x68] sm:$0xff]
    %v406 = vld [vmem:[%s3 + $0x70] sm:$0xff]
    %v407 = vld [vmem:[%s3 + $0x78] sm:$0xff]
    %v408 = vld [vmem:[%s4] sm:$0x3]
    %v410 = vlaneseq
    %v411 = vshrl.u32 %v410, 7
    %v412 = vsub.s32 0, %v411
    %v413 = vrot.slane %v408, %v412
    %v414 = vlaneseq
    %v415 = vshrl.u32 %v414, 7
    %v416 = vsub.s32 1, %v415
    %v417 = vrot.slane %v408, %v416
    %v436 = vunpack.c.l.b16 %v392
    %v437 = vunpack.c.h.b16 %v392
    %v438 = vunpack.c.l.b16 %v393
    %v439 = vunpack.c.h.b16 %v393
    %v440 = vunpack.c.l.b16 %v394
    %v441 = vunpack.c.h.b16 %v394
    %v442 = vunpack.c.l.b16 %v395
    %v443 = vunpack.c.h.b16 %v395
    %v444 = vunpack.c.l.b16 %v396
    %v445 = vunpack.c.h.b16 %v396
    %v446 = vunpack.c.l.b16 %v397
    %v447 = vunpack.c.h.b16 %v397
    %v448 = vunpack.c.l.b16 %v398
    %v449 = vunpack.c.h.b16 %v398
    %v450 = vunpack.c.l.b16 %v399
    %v451 = vunpack.c.h.b16 %v399
    %v452 = vunpack.c.l.b16 %v400
    %v453 = vunpack.c.h.b16 %v400
    %v454 = vunpack.c.l.b16 %v401
    %v455 = vunpack.c.h.b16 %v401
    %v456 = vunpack.c.l.b16 %v402
    %v457 = vunpack.c.h.b16 %v402
    %v458 = vunpack.c.l.b16 %v403
    %v459 = vunpack.c.h.b16 %v403
    %v460 = vunpack.c.l.b16 %v404
    %v461 = vunpack.c.h.b16 %v404
    %v462 = vunpack.c.l.b16 %v405
    %v463 = vunpack.c.h.b16 %v405
    %v464 = vunpack.c.l.b16 %v406
    %v465 = vunpack.c.h.b16 %v406
    %v466 = vunpack.c.l.b16 %v407
    %v467 = vunpack.c.h.b16 %v407
    %v468 = vpack.c.b16 %v438, %v436
    %v469 = vpack.c.b16 %v439, %v437
    %v470 = vpack.c.b16 %v442, %v440
    %v471 = vpack.c.b16 %v443, %v441
    %v472 = vpack.c.b16 %v446, %v444
    %v473 = vpack.c.b16 %v447, %v445
    %v474 = vpack.c.b16 %v450, %v448
    %v475 = vpack.c.b16 %v451, %v449
    %v476 = vpack.c.b16 %v454, %v452
    %v477 = vpack.c.b16 %v455, %v453
    %v478 = vpack.c.b16 %v458, %v456
    %v479 = vpack.c.b16 %v459, %v457
    %v480 = vpack.c.b16 %v462, %v460
    %v481 = vpack.c.b16 %v463, %v461
    %v482 = vpack.c.b16 %v466, %v464
    %v483 = vpack.c.b16 %v467, %v465
    %500 = vmatprep.subr.bf16.mxu0 %v469
    %501 = vmatpush1.bf16.msra.mxu0 %v468
    %502 = vmatprep.subr.bf16.mxu0 %v471
    %503 = vmatpush1.bf16.msra.mxu0 %v470
    %504 = vmatprep.subr.bf16.mxu0 %v473
    %505 = vmatpush1.bf16.msra.mxu0 %v472
    %506 = vmatprep.subr.bf16.mxu0 %v475
    %507 = vmatpush1.bf16.msra.mxu0 %v474
    %508 = vmatprep.subr.bf16.mxu0 %v477
    %509 = vmatpush1.bf16.msra.mxu0 %v476
    %510 = vmatprep.subr.bf16.mxu0 %v479
    %511 = vmatpush1.bf16.msra.mxu0 %v478
    %512 = vmatprep.subr.bf16.mxu0 %v481
    %513 = vmatpush1.bf16.msra.mxu0 %v480
    %514 = vmatprep.subr.bf16.mxu0 %v483
    %515 = vmatpush1.bf16.msra.mxu0 %v482
    %516 = vmatprep.subr.bf16.mxu0 0
    %517 = vmatpush1.bf16.msra.mxu0 0
    %518 = vmatprep.subr.bf16.mxu0 0
    %519 = vmatpush1.bf16.msra.mxu0 0
    %520 = vmatprep.subr.bf16.mxu0 0
    %521 = vmatpush1.bf16.msra.mxu0 0
    %522 = vmatprep.subr.bf16.mxu0 0
    %523 = vmatpush1.bf16.msra.mxu0 0
    %524 = vmatprep.subr.bf16.mxu0 0
    %525 = vmatpush1.bf16.msra.mxu0 0
    %526 = vmatprep.subr.bf16.mxu0 0
    %527 = vmatpush1.bf16.msra.mxu0 0
    %528 = vmatprep.subr.bf16.mxu0 0
    %529 = vmatpush1.bf16.msra.mxu0 0
    %530 = vmatprep.subr.bf16.mxu0 0
    %531 = vmatpush1.bf16.msra.mxu0 0
    %532 = vmatprep.mubr.bf16.mxu0 0
    %533 = vmatmul.mubr.bf16.gmra.mrb[0].mxu0 %v391
    %v534 = vpop.f32.mrb[0].mxu0
    %v535 = vadd.f32 %v413, %v534
    %v536 = vpop.f32.mrb[0].mxu0
    %v537 = vadd.f32 %v417, %v536
    %v538 = vpop.f32.mrb[0].mxu0
    %v539 = vpop.f32.mrb[0].mxu0
    %540 = vdwg.mxu0
    %v541 = vmax.f32 %v535, 0.0
    %v542 = vmax.f32 %v537, 0.0
    %v543 = vld [vmem:[#allocation3] sm:$0xf]
    %v544 = vpack.c.bf16 %v541, %v541
    %v545 = vpack.c.bf16 %v542, %v542
    %v546 = vld [vmem:[#allocation4] sm:$0xf]
    %v547 = vld [vmem:[#allocation4 + $0x4] sm:$0xf]
    %v548 = vld [vmem:[#allocation4 + $0x8] sm:$0xf]
    %v549 = vld [vmem:[#allocation4 + $0xc] sm:$0xf]
    %v550 = vld [vmem:[#allocation4 + $0x10] sm:$0xf]
    %v551 = vld [vmem:[#allocation4 + $0x14] sm:$0xf]
    %v552 = vld [vmem:[#allocation4 + $0x18] sm:$0xf]
    %v553 = vld [vmem:[#allocation4 + $0x1c] sm:$0xf]
    %v554 = vld [vmem:[#allocation4 + $0x20] sm:$0xf]
    %v555 = vld [vmem:[#allocation4 + $0x24] sm:$0xf]
    %v556 = vld [vmem:[#allocation4 + $0x28] sm:$0xf]
    %v557 = vld [vmem:[#allocation4 + $0x2c] sm:$0xf]
    %v558 = vld [vmem:[#allocation4 + $0x30] sm:$0xf]
    %v559 = vld [vmem:[#allocation4 + $0x34] sm:$0xf]
    %v560 = vld [vmem:[#allocation4 + $0x38] sm:$0xf]
    %v561 = vld [vmem:[#allocation4 + $0x3c] sm:$0xf]
    %v562 = vld [vmem:[#allocation4 + $0x40] sm:$0xf]
    %v563 = vld [vmem:[#allocation4 + $0x44] sm:$0xf]
    %v564 = vld [vmem:[#allocation4 + $0x48] sm:$0xf]
    %v565 = vld [vmem:[#allocation4 + $0x4c] sm:$0xf]
    %v566 = vld [vmem:[#allocation4 + $0x50] sm:$0xf]
    %v567 = vld [vmem:[#allocation4 + $0x54] sm:$0xf]
    %v568 = vld [vmem:[#allocation4 + $0x58] sm:$0xf]
    %v569 = vld [vmem:[#allocation4 + $0x5c] sm:$0xf]
    %v570 = vld [vmem:[#allocation4 + $0x60] sm:$0xf]
    %v571 = vld [vmem:[#allocation4 + $0x64] sm:$0xf]
    %v572 = vld [vmem:[#allocation4 + $0x68] sm:$0xf]
    %v573 = vld [vmem:[#allocation4 + $0x6c] sm:$0xf]
    %v574 = vld [vmem:[#allocation4 + $0x70] sm:$0xf]
    %v575 = vld [vmem:[#allocation4 + $0x74] sm:$0xf]
    %v576 = vld [vmem:[#allocation4 + $0x78] sm:$0xf]
    %v577 = vld [vmem:[#allocation4 + $0x7c] sm:$0xf]
    %v610 = vunpack.c.l.b16 %v546
    %v611 = vunpack.c.l.b16 %v547
    %v612 = vunpack.c.l.b16 %v548
    %v613 = vunpack.c.l.b16 %v549
    %v614 = vunpack.c.l.b16 %v550
    %v615 = vunpack.c.l.b16 %v551
    %v616 = vunpack.c.l.b16 %v552
    %v617 = vunpack.c.l.b16 %v553
    %v618 = vunpack.c.l.b16 %v554
    %v619 = vunpack.c.l.b16 %v555
    %v620 = vunpack.c.l.b16 %v556
    %v621 = vunpack.c.l.b16 %v557
    %v622 = vunpack.c.l.b16 %v558
    %v623 = vunpack.c.l.b16 %v559
    %v624 = vunpack.c.l.b16 %v560
    %v625 = vunpack.c.l.b16 %v561
    %v626 = vunpack.c.l.b16 %v562
    %v627 = vunpack.c.l.b16 %v563
    %v628 = vunpack.c.l.b16 %v564
    %v629 = vunpack.c.l.b16 %v565
    %v630 = vunpack.c.l.b16 %v566
    %v631 = vunpack.c.l.b16 %v567
    %v632 = vunpack.c.l.b16 %v568
    %v633 = vunpack.c.l.b16 %v569
    %v634 = vunpack.c.l.b16 %v570
    %v635 = vunpack.c.l.b16 %v571
    %v636 = vunpack.c.l.b16 %v572
    %v637 = vunpack.c.l.b16 %v573
    %v638 = vunpack.c.l.b16 %v574
    %v639 = vunpack.c.l.b16 %v575
    %v640 = vunpack.c.l.b16 %v576
    %v641 = vunpack.c.l.b16 %v577
    %v642 = vpack.c.b16 %v611, %v610
    %v643 = vpack.c.b16 %v613, %v612
    %v644 = vpack.c.b16 %v615, %v614
    %v645 = vpack.c.b16 %v617, %v616
    %v646 = vpack.c.b16 %v619, %v618
    %v647 = vpack.c.b16 %v621, %v620
    %v648 = vpack.c.b16 %v623, %v622
    %v649 = vpack.c.b16 %v625, %v624
    %v650 = vpack.c.b16 %v627, %v626
    %v651 = vpack.c.b16 %v629, %v628
    %v652 = vpack.c.b16 %v631, %v630
    %v653 = vpack.c.b16 %v633, %v632
    %v654 = vpack.c.b16 %v635, %v634
    %v655 = vpack.c.b16 %v637, %v636
    %v656 = vpack.c.b16 %v639, %v638
    %v657 = vpack.c.b16 %v641, %v640
    %674 = vmatprep.subr.bf16.mxu0 0
    %675 = vmatpush1.bf16.msra.mxu0 %v642
    %676 = vmatprep.subr.bf16.mxu0 0
    %677 = vmatpush1.bf16.msra.mxu0 %v643
    %678 = vmatprep.subr.bf16.mxu0 0
    %679 = vmatpush1.bf16.msra.mxu0 %v644
    %680 = vmatprep.subr.bf16.mxu0 0
    %681 = vmatpush1.bf16.msra.mxu0 %v645
    %682 = vmatprep.subr.bf16.mxu0 0
    %683 = vmatpush1.bf16.msra.mxu0 %v646
    %684 = vmatprep.subr.bf16.mxu0 0
    %685 = vmatpush1.bf16.msra.mxu0 %v647
    %686 = vmatprep.subr.bf16.mxu0 0
    %687 = vmatpush1.bf16.msra.mxu0 %v648
    %688 = vmatprep.subr.bf16.mxu0 0
    %689 = vmatpush1.bf16.msra.mxu0 %v649
    %690 = vmatprep.subr.bf16.mxu0 0
    %691 = vmatpush1.bf16.msra.mxu0 %v650
    %692 = vmatprep.subr.bf16.mxu0 0
    %693 = vmatpush1.bf16.msra.mxu0 %v651
    %694 = vmatprep.subr.bf16.mxu0 0
    %695 = vmatpush1.bf16.msra.mxu0 %v652
    %696 = vmatprep.subr.bf16.mxu0 0
    %697 = vmatpush1.bf16.msra.mxu0 %v653
    %698 = vmatprep.subr.bf16.mxu0 0
    %699 = vmatpush1.bf16.msra.mxu0 %v654
    %700 = vmatprep.subr.bf16.mxu0 0
    %701 = vmatpush1.bf16.msra.mxu0 %v655
    %702 = vmatprep.subr.bf16.mxu0 0
    %703 = vmatpush1.bf16.msra.mxu0 %v656
    %704 = vmatprep.subr.bf16.mxu0 0
    %705 = vmatpush1.bf16.msra.mxu0 %v657
    %706 = vmatprep.mubr.bf16.mxu0 %v545
    %707 = vmatmul.mubr.bf16.gmra.mrb[0].mxu0 %v544
    %v708 = vpop.f32.mrb[0].mxu0
    %v709 = vadd.f32 0.0, %v708
    %v710 = vpop.f32.mrb[0].mxu0
    %v711 = vpop.f32.mrb[0].mxu0
    %v712 = vpop.f32.mrb[0].mxu0
    %713 = vdwg.mxu0
    %v714 = vadd.f32 %v543, %v709
    %715 = vst [vmem:[#allocation3] sm:$0xf] %v714
    // Predicated region
    $region46: #{tpu_custom_call.1} parent=1 // pred_check
      %p716 = pneg %p48
    $region47: #{tpu_custom_call.1} parent=1 // pred_check_branch
      %718 = sbr.rel (%p716) target = $region49
    $region48: #{tpu_custom_call.1} parent=1 // pred_region
      %v719 = vld [vmem:[#allocation3] sm:$0xf]
      %v720 = vld [vmem:[%s6] sm:$0x1]
      %v722 = vlaneseq
      %v723 = vshrl.u32 %v722, 7
      %v724 = vsub.s32 0, %v723
      %v725 = vrot.slane %v720, %v724
      %v727 = vadd.f32 %v719, %v725
      %v728 = vld [vmem:[%s0] sm:$0xf]
      %v729 = vadd.f32 %v727, %v728
      %730 = vst [vmem:[#allocation7] sm:$0xf] %v729
    $region49: #{tpu_custom_call.1} parent=1 // pred_fallthru
      _
    // Predicated region
    $region50: #{tpu_custom_call.1} parent=1 // pred_check
      _
    $region51: #{tpu_custom_call.1} parent=1 // pred_check_branch
      %732 = sbr.rel (0) target = $region53
    $region52: #{tpu_custom_call.1} parent=1 // pred_region
      %s734 = ssub.s32 64, 64
      %735 = vsyncadd [#allocation6], %s734
      %s737 = sshll.u32 [#allocation7], 4
      %s738 = int_to_ptr.vmem [resolvable:$true] %s737
      %740 = dma.vmem_to_hbm [thread:$0]  %s738, 64, %s9, [#allocation6]
    $region53: #{tpu_custom_call.1} parent=1 // pred_fallthru
      _
    // Predicated region
    $region54: #{tpu_custom_call.1} parent=1 // pred_check
      _
    $region55: #{tpu_custom_call.1} parent=1 // pred_check_branch
      %742 = sbr.rel (0) target = $region57
    $region56: #{tpu_custom_call.1} parent=1 // pred_region
      %743 = dma.done [#allocation6], 64
    $region57: #{tpu_custom_call.1} parent=1 // pred_fallthru
      _
    %744 = vsyncpa [#allocation5], 1
    %745 = vsyncpa [#allocation6], 1

</llo_original>
